<compile_context>
chip_gen: v7x
topology: tpu7x:2x2x1
jax: 0.10.0
libtpu: 0.0.40
codegen_flags: <defaults>
</compile_context>

<pallas_src>
import jax
import jax.numpy as jnp
from jax.experimental import pallas as pl
from jax.experimental.pallas import tpu as pltpu

HIDDEN = 256
TILE_B_MAX = 2048  # per-step batch tile; multiple of 128; ~6 MB VMEM live -> fits v5e/v6e/v7x


def _round_up(x, m):
    return ((x + m - 1) // m) * m


def softq_kernel(x0_ref, act_ref, w1s_ref, w1a_ref, b1_ref, w2_ref, b2_ref,
                 w3_ref, b3_ref, out_ref):
    # x1 = cat([x0, action], 1): realized as two dots into one fp32 accumulator
    # (concat + bf16 cast fused into the kernel; no x_cat in HBM).
    x0 = x0_ref[...].astype(jnp.bfloat16)
    act = act_ref[...].astype(jnp.bfloat16)
    h1 = jnp.dot(x0, w1s_ref[...], preferred_element_type=jnp.float32)
    h1 = h1 + jnp.dot(act, w1a_ref[...], preferred_element_type=jnp.float32)
    # x2 = relu(linear1(x1))
    h1 = jnp.maximum(h1 + b1_ref[...], 0.0)
    # x3 = relu(linear2(x2))
    h2 = jnp.dot(h1.astype(jnp.bfloat16), w2_ref[...],
                 preferred_element_type=jnp.float32)
    h2 = jnp.maximum(h2 + b2_ref[...], 0.0)
    # x4 = linear3(x3): N=1 layer emitted as a lane-dense [1, tile_b] row
    # via one small MXU pass (w3_row [1,256] · h2 [tile_b,256] over K=256).
    q = jax.lax.dot_general(w3_ref[...], h2,
                            dimension_numbers=(((1,), (1,)), ((), ())),
                            preferred_element_type=jnp.float32)
    out_ref[...] = (q + b3_ref[0, 0]).astype(out_ref.dtype)


def softq_forward(x0, action, params, tile_b=None):
    """x0: [B, state_dim] backbone features, action: [B, action_dim] -> [B, 1]."""
    w1, b1, w2, b2, w3, b3 = params
    B, state_dim = x0.shape
    action_dim = action.shape[1]
    in1 = state_dim + action_dim

    # Adaptive batch tile: big enough to amortize the ~0.35 us/step pipeline
    # overhead, small enough not to over-pad tiny batches.
    if tile_b is None:
        tile_b = min(TILE_B_MAX, _round_up(max(B, 1), 128))
    b_pad = _round_up(B, tile_b)
    if b_pad != B:
        x0 = jnp.pad(x0, ((0, b_pad - B), (0, 0)))
        action = jnp.pad(action, ((0, b_pad - B), (0, 0)))
    num_tiles = b_pad // tile_b

    # bf16 weights for the MXU (fp32 accumulation); output layer stays fp32.
    w1s = w1[:state_dim].astype(jnp.bfloat16)          # [state_dim, 256]
    w1a = w1[state_dim:].astype(jnp.bfloat16)          # [action_dim, 256]
    w2b = w2.astype(jnp.bfloat16)                      # [256, 256]
    b1f = b1.astype(jnp.float32)                       # [1, 256]
    b2f = b2.astype(jnp.float32)                       # [1, 256]
    w3_row = w3.reshape(1, HIDDEN).astype(jnp.float32)  # [1, 256] fp32 end-to-end
    b3f = b3.reshape(1, 1).astype(jnp.float32)          # [1, 1] scalar -> SMEM

    const = lambda i: (0, 0)  # weights/biases: one block, VMEM-resident

    # Advisory cost estimate for XLA's scheduler around the custom call.
    flops = 2 * b_pad * (in1 * HIDDEN + HIDDEN * HIDDEN + HIDDEN)
    weight_bytes = (in1 * HIDDEN + HIDDEN * HIDDEN) * 2 + (3 * HIDDEN + 1) * 4
    bytes_accessed = b_pad * in1 * 4 + weight_bytes + b_pad * 4
    cost = pl.CostEstimate(flops=flops, transcendentals=0,
                           bytes_accessed=bytes_accessed)

    out = pl.pallas_call(
        softq_kernel,
        grid=(num_tiles,),
        # Lane-dense output: one [1, tile_b] row per grid step (unmasked vst),
        # reshaped back to [B, 1] below.
        out_shape=jax.ShapeDtypeStruct((num_tiles, tile_b), jnp.float32),
        in_specs=[
            pl.BlockSpec((tile_b, state_dim), lambda i: (i, 0)),   # x0 tile
            pl.BlockSpec((tile_b, action_dim), lambda i: (i, 0)),  # action tile
            pl.BlockSpec((state_dim, HIDDEN), const),              # W1 (state rows)
            pl.BlockSpec((action_dim, HIDDEN), const),             # W1 (action rows)
            pl.BlockSpec((1, HIDDEN), const),                      # b1
            pl.BlockSpec((HIDDEN, HIDDEN), const),                 # W2
            pl.BlockSpec((1, HIDDEN), const),                      # b2
            pl.BlockSpec((1, HIDDEN), const),                      # W3 row (fp32)
            pl.BlockSpec(memory_space=pltpu.MemorySpace.SMEM),     # b3 scalar
        ],
        out_specs=pl.BlockSpec((1, tile_b), lambda i: (i, 0)),
        compiler_params=pltpu.CompilerParams(
            # v7x: swap to pltpu.CORE_PARALLEL / pl.core_map for guaranteed
            # 2-TC batch sharding; "parallel" kept for cross-gen portability.
            dimension_semantics=("parallel",),
            vmem_limit_bytes=32 * 1024 * 1024,
        ),
        cost_estimate=cost,
    )(x0, action, w1s, w1a, b1f, w2b, b2f, w3_row, b3f)

    return out.reshape(b_pad, 1)[:B]


def init_params(key, state_dim, action_dim, hidden=HIDDEN, edge=0.003):
    """fp32 master params mirroring nn.Linear defaults (+ uniform(-edge, edge) on linear3)."""
    ks = jax.random.split(key, 6)
    in1 = state_dim + action_dim

    def unif(k, shape, bound):
        return jax.random.uniform(k, shape, jnp.float32, -bound, bound)

    bound1 = 1.0 / (in1 ** 0.5)
    bound2 = 1.0 / (hidden ** 0.5)
    w1 = unif(ks[0], (in1, hidden), bound1)   # [in, out]
    b1 = unif(ks[1], (1, hidden), bound1)
    w2 = unif(ks[2], (hidden, hidden), bound2)
    b2 = unif(ks[3], (1, hidden), bound2)
    w3 = unif(ks[4], (hidden, 1), edge)       # linear3.weight.uniform_(-edge, edge)
    b3 = unif(ks[5], (1, 1), edge)            # linear3.bias.uniform_(-edge, edge)
    return (w1, b1, w2, b2, w3, b3)


def softq_reference(x0, action, params):
    """Pure-JAX fp32 reference of the PyTorch forward."""
    w1, b1, w2, b2, w3, b3 = params
    x1 = jnp.concatenate([x0, action], axis=1)
    x2 = jax.nn.relu(x1 @ w1 + b1)
    x3 = jax.nn.relu(x2 @ w2 + b2)
    return x3 @ w3 + b3


if __name__ == "__main__":
    B, state_dim, action_dim = 2, 32, 8
    key = jax.random.PRNGKey(0)
    k_x, k_a, k_p = jax.random.split(key, 3)

    x0 = jax.random.normal(k_x, (B, state_dim), jnp.float32)      # backbone features
    action = jax.random.normal(k_a, (B, action_dim), jnp.float32)
    params = init_params(k_p, state_dim, action_dim)

    q = jax.block_until_ready(softq_forward(x0, action, params))
    q_ref = softq_reference(x0, action, params)

    assert q.shape == (B, 1), q.shape
    # bf16 weights/activations with fp32 accumulation -> loosened tolerance.
    assert jnp.allclose(q, q_ref, atol=2e-2, rtol=2e-2), (q, q_ref)
    print("KERNEL_OK")
</pallas_src>

<mosaic_0001>
module attributes {stable_mosaic.version = 11 : i64} {
  func.func @softq_kernel(%arg0: i32, %arg1: memref<128x32xf32, #tpu.memory_space<vmem>>, %arg2: memref<128x8xf32, #tpu.memory_space<vmem>>, %arg3: memref<32x256xbf16, #tpu.memory_space<vmem>>, %arg4: memref<8x256xbf16, #tpu.memory_space<vmem>>, %arg5: memref<1x256xf32, #tpu.memory_space<vmem>>, %arg6: memref<256x256xbf16, #tpu.memory_space<vmem>>, %arg7: memref<1x256xf32, #tpu.memory_space<vmem>>, %arg8: memref<1x256xf32, #tpu.memory_space<vmem>>, %arg9: memref<1x1xf32, #tpu.memory_space<smem>>, %arg10: memref<1x128xf32, #tpu.memory_space<vmem>>) attributes {dimension_semantics = [#tpu.dimension_semantics<parallel>], iteration_bounds = array<i64: 1>, scalar_prefetch = 0 : i64, scratch_operands = 0 : i64, tpu.core_type = #tpu.core_type<tc>, window_params = [{transform_indices = @transform_0, window_bounds = array<i64: 128, 32>}, {transform_indices = @transform_1, window_bounds = array<i64: 128, 8>}, {pipeline_mode = #tpu.pipeline_mode<synchronous>, transform_indices = @transform_2, window_bounds = array<i64: 32, 256>}, {pipeline_mode = #tpu.pipeline_mode<synchronous>, transform_indices = @transform_3, window_bounds = array<i64: 8, 256>}, {pipeline_mode = #tpu.pipeline_mode<synchronous>, transform_indices = @transform_4, window_bounds = array<i64: 1, 256>}, {pipeline_mode = #tpu.pipeline_mode<synchronous>, transform_indices = @transform_5, window_bounds = array<i64: 256, 256>}, {pipeline_mode = #tpu.pipeline_mode<synchronous>, transform_indices = @transform_6, window_bounds = array<i64: 1, 256>}, {pipeline_mode = #tpu.pipeline_mode<synchronous>, transform_indices = @transform_7, window_bounds = array<i64: 1, 256>}, {transform_indices = @transform_8, window_bounds = array<i64: 1, 1>}, {transform_indices = @transform_9, window_bounds = array<i64: 1, 128>}]} {
    %c0 = arith.constant 0 : index
    %c0_0 = arith.constant 0 : index
    %0 = vector.load %arg1[%c0, %c0_0] : memref<128x32xf32, #tpu.memory_space<vmem>>, vector<128x32xf32>
    %1 = arith.truncf %0 : vector<128x32xf32> to vector<128x32xbf16>
    %c0_1 = arith.constant 0 : index
    %c0_2 = arith.constant 0 : index
    %2 = vector.load %arg2[%c0_1, %c0_2] : memref<128x8xf32, #tpu.memory_space<vmem>>, vector<128x8xf32>
    %3 = arith.truncf %2 : vector<128x8xf32> to vector<128x8xbf16>
    %c0_3 = arith.constant 0 : index
    %c0_4 = arith.constant 0 : index
    %4 = vector.load %arg3[%c0_3, %c0_4] : memref<32x256xbf16, #tpu.memory_space<vmem>>, vector<32x256xbf16>
    %cst = arith.constant dense<0.000000e+00> : vector<128x256xf32>
    %5 = tpu.matmul %1, %4, %cst {dimension_numbers = #tpu.dot_dimension_numbers<[1], [0], [0], [1], [0, 0, 1, 1], [], []>} : vector<128x32xbf16>, vector<32x256xbf16>, vector<128x256xf32> -> vector<128x256xf32>
    %c0_5 = arith.constant 0 : index
    %c0_6 = arith.constant 0 : index
    %6 = vector.load %arg4[%c0_5, %c0_6] : memref<8x256xbf16, #tpu.memory_space<vmem>>, vector<8x256xbf16>
    %cst_7 = arith.constant dense<0.000000e+00> : vector<128x256xf32>
    %7 = tpu.matmul %3, %6, %cst_7 {dimension_numbers = #tpu.dot_dimension_numbers<[1], [0], [0], [1], [0, 0, 1, 1], [], []>} : vector<128x8xbf16>, vector<8x256xbf16>, vector<128x256xf32> -> vector<128x256xf32>
    %8 = arith.addf %5, %7 : vector<128x256xf32>
    %c0_8 = arith.constant 0 : index
    %c0_9 = arith.constant 0 : index
    %9 = vector.load %arg5[%c0_8, %c0_9] : memref<1x256xf32, #tpu.memory_space<vmem>>, vector<1x256xf32>
    %10 = vector.broadcast %9 : vector<1x256xf32> to vector<128x256xf32>
    %11 = arith.addf %8, %10 : vector<128x256xf32>
    %cst_10 = arith.constant 0.000000e+00 : f32
    %12 = vector.broadcast %cst_10 : f32 to vector<128x256xf32>
    %13 = arith.maximumf %11, %12 : vector<128x256xf32>
    %14 = arith.truncf %13 : vector<128x256xf32> to vector<128x256xbf16>
    %c0_11 = arith.constant 0 : index
    %c0_12 = arith.constant 0 : index
    %15 = vector.load %arg6[%c0_11, %c0_12] : memref<256x256xbf16, #tpu.memory_space<vmem>>, vector<256x256xbf16>
    %cst_13 = arith.constant dense<0.000000e+00> : vector<128x256xf32>
    %16 = tpu.matmul %14, %15, %cst_13 {dimension_numbers = #tpu.dot_dimension_numbers<[1], [0], [0], [1], [0, 0, 1, 1], [], []>} : vector<128x256xbf16>, vector<256x256xbf16>, vector<128x256xf32> -> vector<128x256xf32>
    %c0_14 = arith.constant 0 : index
    %c0_15 = arith.constant 0 : index
    %17 = vector.load %arg7[%c0_14, %c0_15] : memref<1x256xf32, #tpu.memory_space<vmem>>, vector<1x256xf32>
    %18 = vector.broadcast %17 : vector<1x256xf32> to vector<128x256xf32>
    %19 = arith.addf %16, %18 : vector<128x256xf32>
    %cst_16 = arith.constant 0.000000e+00 : f32
    %20 = vector.broadcast %cst_16 : f32 to vector<128x256xf32>
    %21 = arith.maximumf %19, %20 : vector<128x256xf32>
    %c0_17 = arith.constant 0 : index
    %c0_18 = arith.constant 0 : index
    %22 = vector.load %arg8[%c0_17, %c0_18] : memref<1x256xf32, #tpu.memory_space<vmem>>, vector<1x256xf32>
    %cst_19 = arith.constant dense<0.000000e+00> : vector<1x128xf32>
    %23 = tpu.matmul %22, %21, %cst_19 {dimension_numbers = #tpu.dot_dimension_numbers<[1], [1], [0], [0], [0, 0, 1, 0], [], []>} : vector<1x256xf32>, vector<128x256xf32>, vector<1x128xf32> -> vector<1x128xf32>
    %c0_20 = arith.constant 0 : index
    %c0_21 = arith.constant 0 : index
    %24 = memref.load %arg9[%c0_20, %c0_21] : memref<1x1xf32, #tpu.memory_space<smem>>
    %25 = vector.broadcast %24 : f32 to vector<1x128xf32>
    %26 = arith.addf %23, %25 : vector<1x128xf32>
    %c0_22 = arith.constant 0 : index
    %c0_23 = arith.constant 0 : index
    %27 = vector.load %arg10[%c0_22, %c0_23] : memref<1x128xf32, #tpu.memory_space<vmem>>, vector<1x128xf32>
    tpu.vector_store %arg10[%c0_22, %c0_23], %26 {strides = array<i32>} : memref<1x128xf32, #tpu.memory_space<vmem>>, vector<1x128xf32>,
    return
  }
  func.func @transform_0(%arg0: i32) -> (i32, i32) {
    %c0_i32 = arith.constant 0 : i32
    %c0_i32_0 = arith.constant 0 : i32
    return %arg0, %c0_i32 : i32, i32
  }
  func.func @transform_1(%arg0: i32) -> (i32, i32) {
    %c0_i32 = arith.constant 0 : i32
    %c0_i32_0 = arith.constant 0 : i32
    return %arg0, %c0_i32 : i32, i32
  }
  func.func @transform_2(%arg0: i32) -> (i32, i32) {
    %c0_i32 = arith.constant 0 : i32
    %c0_i32_0 = arith.constant 0 : i32
    %c0_i32_1 = arith.constant 0 : i32
    return %c0_i32, %c0_i32_0 : i32, i32
  }
  func.func @transform_3(%arg0: i32) -> (i32, i32) {
    %c0_i32 = arith.constant 0 : i32
    %c0_i32_0 = arith.constant 0 : i32
    %c0_i32_1 = arith.constant 0 : i32
    return %c0_i32, %c0_i32_0 : i32, i32
  }
  func.func @transform_4(%arg0: i32) -> (i32, i32) {
    %c0_i32 = arith.constant 0 : i32
    %c0_i32_0 = arith.constant 0 : i32
    %c0_i32_1 = arith.constant 0 : i32
    return %c0_i32, %c0_i32_0 : i32, i32
  }
  func.func @transform_5(%arg0: i32) -> (i32, i32) {
    %c0_i32 = arith.constant 0 : i32
    %c0_i32_0 = arith.constant 0 : i32
    %c0_i32_1 = arith.constant 0 : i32
    return %c0_i32, %c0_i32_0 : i32, i32
  }
  func.func @transform_6(%arg0: i32) -> (i32, i32) {
    %c0_i32 = arith.constant 0 : i32
    %c0_i32_0 = arith.constant 0 : i32
    %c0_i32_1 = arith.constant 0 : i32
    return %c0_i32, %c0_i32_0 : i32, i32
  }
  func.func @transform_7(%arg0: i32) -> (i32, i32) {
    %c0_i32 = arith.constant 0 : i32
    %c0_i32_0 = arith.constant 0 : i32
    %c0_i32_1 = arith.constant 0 : i32
    return %c0_i32, %c0_i32_0 : i32, i32
  }
  func.func @transform_8(%arg0: i32) -> (i32, i32) {
    %c0_i32 = arith.constant 0 : i32
    %c0_i32_0 = arith.constant 0 : i32
    %c0_i32_1 = arith.constant 0 : i32
    return %c0_i32, %c0_i32_0 : i32, i32
  }
  func.func @transform_9(%arg0: i32) -> (i32, i32) {
    %c0_i32 = arith.constant 0 : i32
    %c0_i32_0 = arith.constant 0 : i32
    return %arg0, %c0_i32 : i32, i32
  }
}

</mosaic_0001>

<llo_original>
// kernel: tpu_custom_call.1
$region0: #{tpu_custom_call.1}
  #allocation0 [shape = 'u32[]', space=smem, size = 0x4, offset = 0x4, fixed_abs, tag = 'smem constant byte address 0x4 - core index']
  #allocation1 [shape = 'u32[144,128]{1,0:T(1,128)}', space=vmem, size = 0x12000, scoped, tag = 'internal scratch']
  #allocation2 [shape = 'f32[1,1]{1,0:T(1,128)S(6)}', space=smem, size = 0x200, scoped, tag = 'scoped memory for tpu_custom_call.1']
  %s0 = inlined_call_operand.vmem [shape: f32[128,32], index: 0, kind: input, shape index: {}]
  %s1 = inlined_call_operand.vmem [shape: f32[128,8], index: 1, kind: input, shape index: {}]
  %s2 = inlined_call_operand.vmem [shape: bf16[32,256], index: 2, kind: input, shape index: {}]
  %s3 = inlined_call_operand.vmem [shape: bf16[8,256], index: 3, kind: input, shape index: {}]
  %s4 = inlined_call_operand.vmem [shape: f32[1,256], index: 4, kind: input, shape index: {}]
  %s5 = inlined_call_operand.vmem [shape: bf16[256,256], index: 5, kind: input, shape index: {}]
  %s6 = inlined_call_operand.vmem [shape: f32[1,256], index: 6, kind: input, shape index: {}]
  %s7 = inlined_call_operand.vmem [shape: f32[1,256], index: 7, kind: input, shape index: {}]
  %s8 = inlined_call_operand.<no memory space> [shape: f32[1,1], index: 8, kind: input, shape index: {}]
  %s9 = inlined_call_operand.hbm [shape: f32[1,128], index: 9, kind: output, shape index: {}]
  %s10 = sld [smem:[#allocation0]]
  $region46: #{tpu_custom_call.1} parent=0
    _
  %s12 = ssub.s32 1, %s10
  %s13 = scalar_select 0, %s12, %s10
  %14 = sst [smem:[#allocation2]] %s8
  $region1: #{tpu_custom_call.1} parent=0
    #allocation3 [shape = 'u8[512]{0}', space=vmem, size = 0x400, scoped, tag = 'output window, operand 0, single buffered']
    #allocation4 [shape = 's32[1]{0}', space=sflag, size = 0x4, scoped, tag = 'scoped memory for tpu_custom_call.1']
    %15 = vsyncpa [#allocation4], 0
    // Predicated region
    $region2: #{tpu_custom_call.1} parent=1 // pred_check
      _
    $region3: #{tpu_custom_call.1} parent=1 // pred_check_branch
      %17 = sbr.rel (0) target = $region5
    $region4: #{tpu_custom_call.1} parent=1 // pred_region
      _
    $region5: #{tpu_custom_call.1} parent=1 // pred_fallthru
      _
    // Predicated region
    $region6: #{tpu_custom_call.1} parent=1 // pred_check
      _
    $region7: #{tpu_custom_call.1} parent=1 // pred_check_branch
      %19 = sbr.rel (0) target = $region9
    $region8: #{tpu_custom_call.1} parent=1 // pred_region
      _
    $region9: #{tpu_custom_call.1} parent=1 // pred_fallthru
      _
    // Predicated region
    $region10: #{tpu_custom_call.1} parent=1 // pred_check
      _
    $region11: #{tpu_custom_call.1} parent=1 // pred_check_branch
      %21 = sbr.rel (0) target = $region13
    $region12: #{tpu_custom_call.1} parent=1 // pred_region
      _
    $region13: #{tpu_custom_call.1} parent=1 // pred_fallthru
      _
    // Predicated region
    $region14: #{tpu_custom_call.1} parent=1 // pred_check
      _
    $region15: #{tpu_custom_call.1} parent=1 // pred_check_branch
      %23 = sbr.rel (0) target = $region17
    $region16: #{tpu_custom_call.1} parent=1 // pred_region
      _
    $region17: #{tpu_custom_call.1} parent=1 // pred_fallthru
      _
    // Predicated region
    $region18: #{tpu_custom_call.1} parent=1 // pred_check
      _
    $region19: #{tpu_custom_call.1} parent=1 // pred_check_branch
      %25 = sbr.rel (0) target = $region21
    $region20: #{tpu_custom_call.1} parent=1 // pred_region
      _
    $region21: #{tpu_custom_call.1} parent=1 // pred_fallthru
      _
    // Predicated region
    $region22: #{tpu_custom_call.1} parent=1 // pred_check
      _
    $region23: #{tpu_custom_call.1} parent=1 // pred_check_branch
      %27 = sbr.rel (0) target = $region25
    $region24: #{tpu_custom_call.1} parent=1 // pred_region
      _
    $region25: #{tpu_custom_call.1} parent=1 // pred_fallthru
      _
    // Predicated region
    $region26: #{tpu_custom_call.1} parent=1 // pred_check
      _
    $region27: #{tpu_custom_call.1} parent=1 // pred_check_branch
      %29 = sbr.rel (0) target = $region29
    $region28: #{tpu_custom_call.1} parent=1 // pred_region
      _
    $region29: #{tpu_custom_call.1} parent=1 // pred_fallthru
      _
    // Predicated region
    $region30: #{tpu_custom_call.1} parent=1 // pred_check
      _
    $region31: #{tpu_custom_call.1} parent=1 // pred_check_branch
      %31 = sbr.rel (0) target = $region33
    $region32: #{tpu_custom_call.1} parent=1 // pred_region
      _
    $region33: #{tpu_custom_call.1} parent=1 // pred_fallthru
      _
    // Predicated region
    $region34: #{tpu_custom_call.1} parent=1 // pred_check
      _
    $region35: #{tpu_custom_call.1} parent=1 // pred_check_branch
      %33 = sbr.rel (0) target = $region37
    $region36: #{tpu_custom_call.1} parent=1 // pred_region
      _
    $region37: #{tpu_custom_call.1} parent=1 // pred_fallthru
      _
    %v35 = vld [vmem:[%s0] sm:$0xff]
    %v36 = vld [vmem:[%s0 + $0x8] sm:$0xff]
    %v37 = vld [vmem:[%s0 + $0x10] sm:$0xff]
    %v38 = vld [vmem:[%s0 + $0x18] sm:$0xff]
    %v39 = vld [vmem:[%s0 + $0x20] sm:$0xff]
    %v40 = vld [vmem:[%s0 + $0x28] sm:$0xff]
    %v41 = vld [vmem:[%s0 + $0x30] sm:$0xff]
    %v42 = vld [vmem:[%s0 + $0x38] sm:$0xff]
    %v43 = vld [vmem:[%s0 + $0x40] sm:$0xff]
    %v44 = vld [vmem:[%s0 + $0x48] sm:$0xff]
    %v45 = vld [vmem:[%s0 + $0x50] sm:$0xff]
    %v46 = vld [vmem:[%s0 + $0x58] sm:$0xff]
    %v47 = vld [vmem:[%s0 + $0x60] sm:$0xff]
    %v48 = vld [vmem:[%s0 + $0x68] sm:$0xff]
    %v49 = vld [vmem:[%s0 + $0x70] sm:$0xff]
    %v50 = vld [vmem:[%s0 + $0x78] sm:$0xff]
    %v51 = vpack.c.bf16 %v36, %v35
    %v52 = vpack.c.bf16 %v38, %v37
    %v53 = vpack.c.bf16 %v40, %v39
    %v54 = vpack.c.bf16 %v42, %v41
    %v55 = vpack.c.bf16 %v44, %v43
    %v56 = vpack.c.bf16 %v46, %v45
    %v57 = vpack.c.bf16 %v48, %v47
    %v58 = vpack.c.bf16 %v50, %v49
    %v59 = vld [vmem:[%s1] sm:$0xff]
    %v60 = vld [vmem:[%s1 + $0x8] sm:$0xff]
    %v61 = vld [vmem:[%s1 + $0x10] sm:$0xff]
    %v62 = vld [vmem:[%s1 + $0x18] sm:$0xff]
    %v63 = vld [vmem:[%s1 + $0x20] sm:$0xff]
    %v64 = vld [vmem:[%s1 + $0x28] sm:$0xff]
    %v65 = vld [vmem:[%s1 + $0x30] sm:$0xff]
    %v66 = vld [vmem:[%s1 + $0x38] sm:$0xff]
    %v67 = vld [vmem:[%s1 + $0x40] sm:$0xff]
    %v68 = vld [vmem:[%s1 + $0x48] sm:$0xff]
    %v69 = vld [vmem:[%s1 + $0x50] sm:$0xff]
    %v70 = vld [vmem:[%s1 + $0x58] sm:$0xff]
    %v71 = vld [vmem:[%s1 + $0x60] sm:$0xff]
    %v72 = vld [vmem:[%s1 + $0x68] sm:$0xff]
    %v73 = vld [vmem:[%s1 + $0x70] sm:$0xff]
    %v74 = vld [vmem:[%s1 + $0x78] sm:$0xff]
    %v75 = vpack.c.bf16 %v60, %v59
    %v76 = vpack.c.bf16 %v62, %v61
    %v77 = vpack.c.bf16 %v64, %v63
    %v78 = vpack.c.bf16 %v66, %v65
    %v79 = vpack.c.bf16 %v68, %v67
    %v80 = vpack.c.bf16 %v70, %v69
    %v81 = vpack.c.bf16 %v72, %v71
    %v82 = vpack.c.bf16 %v74, %v73
    %v83 = vld [vmem:[%s2] sm:$0xff]
    %v84 = vld [vmem:[%s2 + $0x8] sm:$0xff]
    %v85 = vld [vmem:[%s2 + $0x10] sm:$0xff]
    %v86 = vld [vmem:[%s2 + $0x18] sm:$0xff]
    %v87 = vld [vmem:[%s3] sm:$0xff]
    %v89 = vunpack.c.l.b16 %v87
    %v90 = vunpack.c.h.b16 %v87
    %v91 = vpack.c.b16 %v89, %v89
    %v92 = vpack.c.b16 %v90, %v90
    %vm93 = vcmask 64512
    %v95 = vsel %vm93, %v75, 0
    %v98 = vsel %vm93, %v76, 0
    %v101 = vsel %vm93, %v77, 0
    %v104 = vsel %vm93, %v78, 0
    %v107 = vsel %vm93, %v79, 0
    %v110 = vsel %vm93, %v80, 0
    %v113 = vsel %vm93, %v81, 0
    %v116 = vsel %vm93, %v82, 0
    %vm118 = vcmask 1043456
    %v120 = vsel %vm118, %v91, 0
    %v123 = vsel %vm118, %v92, 0
    %125 = vmatprep.subr.bf16.mxu0 %v123
    %126 = vmatpush1.bf16.msra.mxu0 %v120
    %127 = vmatprep.subr.bf16.mxu0 0
    %128 = vmatpush1.bf16.msra.mxu0 0
    %129 = vmatprep.subr.bf16.mxu0 0
    %130 = vmatpush1.bf16.msra.mxu0 0
    %131 = vmatprep.subr.bf16.mxu0 0
    %132 = vmatpush1.bf16.msra.mxu0 0
    %133 = vmatprep.subr.bf16.mxu0 0
    %134 = vmatpush1.bf16.msra.mxu0 0
    %135 = vmatprep.subr.bf16.mxu0 0
    %136 = vmatpush1.bf16.msra.mxu0 0
    %137 = vmatprep.subr.bf16.mxu0 0
    %138 = vmatpush1.bf16.msra.mxu0 0
    %139 = vmatprep.subr.bf16.mxu0 0
    %140 = vmatpush1.bf16.msra.mxu0 0
    %141 = vmatprep.subr.bf16.mxu0 0
    %142 = vmatpush1.bf16.msra.mxu0 0
    %143 = vmatprep.subr.bf16.mxu0 0
    %144 = vmatpush1.bf16.msra.mxu0 0
    %145 = vmatprep.subr.bf16.mxu0 0
    %146 = vmatpush1.bf16.msra.mxu0 0
    %147 = vmatprep.subr.bf16.mxu0 0
    %148 = vmatpush1.bf16.msra.mxu0 0
    %149 = vmatprep.subr.bf16.mxu0 0
    %150 = vmatpush1.bf16.msra.mxu0 0
    %151 = vmatprep.subr.bf16.mxu0 0
    %152 = vmatpush1.bf16.msra.mxu0 0
    %153 = vmatprep.subr.bf16.mxu0 0
    %154 = vmatpush1.bf16.msra.mxu0 0
    %155 = vmatprep.subr.bf16.mxu0 0
    %156 = vmatpush1.bf16.msra.mxu0 0
    %157 = vmatprep.mubr.bf16.mxu0 0
    %158 = vmatmul.mubr.bf16.gmra.mrb[0].mxu0 %v95
    %v159 = vpop.f32.mrb[0].mxu0
    %v160 = vadd.f32 0.0, %v159
    %v161 = vpop.f32.mrb[0].mxu0
    %v162 = vadd.f32 0.0, %v161
    %v163 = vpop.f32.mrb[0].mxu0
    %v164 = vadd.f32 0.0, %v163
    %v165 = vpop.f32.mrb[0].mxu0
    %v166 = vadd.f32 0.0, %v165
    %167 = vmatprep.mubr.bf16.mxu0 0
    %168 = vmatmul.mubr.bf16.gmra.mrb[0].mxu0 %v98
    %v169 = vpop.f32.mrb[0].mxu0
    %v170 = vadd.f32 0.0, %v169
    %v171 = vpop.f32.mrb[0].mxu0
    %v172 = vadd.f32 0.0, %v171
    %v173 = vpop.f32.mrb[0].mxu0
    %v174 = vadd.f32 0.0, %v173
    %v175 = vpop.f32.mrb[0].mxu0
    %v176 = vadd.f32 0.0, %v175
    %177 = vmatprep.mubr.bf16.mxu0 0
    %178 = vmatmul.mubr.bf16.gmra.mrb[0].mxu0 %v101
    %v179 = vpop.f32.mrb[0].mxu0
    %v180 = vadd.f32 0.0, %v179
    %v181 = vpop.f32.mrb[0].mxu0
    %v182 = vadd.f32 0.0, %v181
    %v183 = vpop.f32.mrb[0].mxu0
    %v184 = vadd.f32 0.0, %v183
    %v185 = vpop.f32.mrb[0].mxu0
    %v186 = vadd.f32 0.0, %v185
    %187 = vmatprep.mubr.bf16.mxu0 0
    %188 = vmatmul.mubr.bf16.gmra.mrb[0].mxu0 %v104
    %v189 = vpop.f32.mrb[0].mxu0
    %v190 = vadd.f32 0.0, %v189
    %v191 = vpop.f32.mrb[0].mxu0
    %v192 = vadd.f32 0.0, %v191
    %v193 = vpop.f32.mrb[0].mxu0
    %v194 = vadd.f32 0.0, %v193
    %v195 = vpop.f32.mrb[0].mxu0
    %v196 = vadd.f32 0.0, %v195
    %197 = vmatprep.mubr.bf16.mxu0 0
    %198 = vmatmul.mubr.bf16.gmra.mrb[0].mxu0 %v107
    %v199 = vpop.f32.mrb[0].mxu0
    %v200 = vadd.f32 0.0, %v199
    %v201 = vpop.f32.mrb[0].mxu0
    %v202 = vadd.f32 0.0, %v201
    %v203 = vpop.f32.mrb[0].mxu0
    %v204 = vadd.f32 0.0, %v203
    %v205 = vpop.f32.mrb[0].mxu0
    %v206 = vadd.f32 0.0, %v205
    %207 = vmatprep.mubr.bf16.mxu0 0
    %208 = vmatmul.mubr.bf16.gmra.mrb[0].mxu0 %v110
    %v209 = vpop.f32.mrb[0].mxu0
    %v210 = vadd.f32 0.0, %v209
    %v211 = vpop.f32.mrb[0].mxu0
    %v212 = vadd.f32 0.0, %v211
    %v213 = vpop.f32.mrb[0].mxu0
    %v214 = vadd.f32 0.0, %v213
    %v215 = vpop.f32.mrb[0].mxu0
    %v216 = vadd.f32 0.0, %v215
    %217 = vmatprep.mubr.bf16.mxu0 0
    %218 = vmatmul.mubr.bf16.gmra.mrb[0].mxu0 %v113
    %v219 = vpop.f32.mrb[0].mxu0
    %v220 = vadd.f32 0.0, %v219
    %v221 = vpop.f32.mrb[0].mxu0
    %v222 = vadd.f32 0.0, %v221
    %v223 = vpop.f32.mrb[0].mxu0
    %v224 = vadd.f32 0.0, %v223
    %v225 = vpop.f32.mrb[0].mxu0
    %v226 = vadd.f32 0.0, %v225
    %227 = vmatprep.mubr.bf16.mxu0 0
    %228 = vmatmul.mubr.bf16.gmra.mrb[0].mxu0 %v116
    %v229 = vpop.f32.mrb[0].mxu0
    %v230 = vadd.f32 0.0, %v229
    %v231 = vpop.f32.mrb[0].mxu0
    %v232 = vadd.f32 0.0, %v231
    %v233 = vpop.f32.mrb[0].mxu0
    %v234 = vadd.f32 0.0, %v233
    %v235 = vpop.f32.mrb[0].mxu0
    %v236 = vadd.f32 0.0, %v235
    %237 = vdwg.mxu0
    %v242 = vunpack.c.l.b16 %v83
    %v243 = vunpack.c.h.b16 %v83
    %v244 = vunpack.c.l.b16 %v84
    %v245 = vunpack.c.h.b16 %v84
    %v246 = vunpack.c.l.b16 %v85
    %v247 = vunpack.c.h.b16 %v85
    %v248 = vunpack.c.l.b16 %v86
    %v249 = vunpack.c.h.b16 %v86
    %v250 = vpack.c.b16 %v244, %v242
    %v251 = vpack.c.b16 %v245, %v243
    %v252 = vpack.c.b16 %v248, %v246
    %v253 = vpack.c.b16 %v249, %v247
    %vm258 = vcmask 261120
    %v260 = vsel %vm258, %v51, 0
    %v263 = vsel %vm258, %v52, 0
    %v266 = vsel %vm258, %v53, 0
    %v269 = vsel %vm258, %v54, 0
    %v272 = vsel %vm258, %v55, 0
    %v275 = vsel %vm258, %v56, 0
    %v278 = vsel %vm258, %v57, 0
    %v281 = vsel %vm258, %v58, 0
    %283 = vmatprep.subr.bf16.mxu0 %v251
    %284 = vmatpush1.bf16.msra.mxu0 %v250
    %285 = vmatprep.subr.bf16.mxu0 %v253
    %286 = vmatpush1.bf16.msra.mxu0 %v252
    %287 = vmatprep.subr.bf16.mxu0 0
    %288 = vmatpush1.bf16.msra.mxu0 0
    %289 = vmatprep.subr.bf16.mxu0 0
    %290 = vmatpush1.bf16.msra.mxu0 0
    %291 = vmatprep.subr.bf16.mxu0 0
    %292 = vmatpush1.bf16.msra.mxu0 0
    %293 = vmatprep.subr.bf16.mxu0 0
    %294 = vmatpush1.bf16.msra.mxu0 0
    %295 = vmatprep.subr.bf16.mxu0 0
    %296 = vmatpush1.bf16.msra.mxu0 0
    %297 = vmatprep.subr.bf16.mxu0 0
    %298 = vmatpush1.bf16.msra.mxu0 0
    %299 = vmatprep.subr.bf16.mxu0 0
    %300 = vmatpush1.bf16.msra.mxu0 0
    %301 = vmatprep.subr.bf16.mxu0 0
    %302 = vmatpush1.bf16.msra.mxu0 0
    %303 = vmatprep.subr.bf16.mxu0 0
    %304 = vmatpush1.bf16.msra.mxu0 0
    %305 = vmatprep.subr.bf16.mxu0 0
    %306 = vmatpush1.bf16.msra.mxu0 0
    %307 = vmatprep.subr.bf16.mxu0 0
    %308 = vmatpush1.bf16.msra.mxu0 0
    %309 = vmatprep.subr.bf16.mxu0 0
    %310 = vmatpush1.bf16.msra.mxu0 0
    %311 = vmatprep.subr.bf16.mxu0 0
    %312 = vmatpush1.bf16.msra.mxu0 0
    %313 = vmatprep.subr.bf16.mxu0 0
    %314 = vmatpush1.bf16.msra.mxu0 0
    %315 = vmatprep.mubr.bf16.mxu0 0
    %316 = vmatmul.mubr.bf16.gmra.mrb[0].mxu0 %v260
    %v317 = vpop.f32.mrb[0].mxu0
    %v318 = vadd.f32 %v160, %v317
    %v319 = vpop.f32.mrb[0].mxu0
    %v320 = vadd.f32 %v162, %v319
    %v321 = vpop.f32.mrb[0].mxu0
    %v322 = vadd.f32 %v164, %v321
    %v323 = vpop.f32.mrb[0].mxu0
    %v324 = vadd.f32 %v166, %v323
    %325 = vmatprep.mubr.bf16.mxu0 0
    %326 = vmatmul.mubr.bf16.gmra.mrb[0].mxu0 %v263
    %v327 = vpop.f32.mrb[0].mxu0
    %v328 = vadd.f32 %v170, %v327
    %v329 = vpop.f32.mrb[0].mxu0
    %v330 = vadd.f32 %v172, %v329
    %v331 = vpop.f32.mrb[0].mxu0
    %v332 = vadd.f32 %v174, %v331
    %v333 = vpop.f32.mrb[0].mxu0
    %v334 = vadd.f32 %v176, %v333
    %335 = vmatprep.mubr.bf16.mxu0 0
    %336 = vmatmul.mubr.bf16.gmra.mrb[0].mxu0 %v266
    %v337 = vpop.f32.mrb[0].mxu0
    %v338 = vadd.f32 %v180, %v337
    %v339 = vpop.f32.mrb[0].mxu0
    %v340 = vadd.f32 %v182, %v339
    %v341 = vpop.f32.mrb[0].mxu0
    %v342 = vadd.f32 %v184, %v341
    %v343 = vpop.f32.mrb[0].mxu0
    %v344 = vadd.f32 %v186, %v343
    %345 = vmatprep.mubr.bf16.mxu0 0
    %346 = vmatmul.mubr.bf16.gmra.mrb[0].mxu0 %v269
    %v347 = vpop.f32.mrb[0].mxu0
    %v348 = vadd.f32 %v190, %v347
    %v349 = vpop.f32.mrb[0].mxu0
    %v350 = vadd.f32 %v192, %v349
    %v351 = vpop.f32.mrb[0].mxu0
    %v352 = vadd.f32 %v194, %v351
    %v353 = vpop.f32.mrb[0].mxu0
    %v354 = vadd.f32 %v196, %v353
    %355 = vmatprep.mubr.bf16.mxu0 0
    %356 = vmatmul.mubr.bf16.gmra.mrb[0].mxu0 %v272
    %v357 = vpop.f32.mrb[0].mxu0
    %v358 = vadd.f32 %v200, %v357
    %v359 = vpop.f32.mrb[0].mxu0
    %v360 = vadd.f32 %v202, %v359
    %v361 = vpop.f32.mrb[0].mxu0
    %v362 = vadd.f32 %v204, %v361
    %v363 = vpop.f32.mrb[0].mxu0
    %v364 = vadd.f32 %v206, %v363
    %365 = vmatprep.mubr.bf16.mxu0 0
    %366 = vmatmul.mubr.bf16.gmra.mrb[0].mxu0 %v275
    %v367 = vpop.f32.mrb[0].mxu0
    %v368 = vadd.f32 %v210, %v367
    %v369 = vpop.f32.mrb[0].mxu0
    %v370 = vadd.f32 %v212, %v369
    %v371 = vpop.f32.mrb[0].mxu0
    %v372 = vadd.f32 %v214, %v371
    %v373 = vpop.f32.mrb[0].mxu0
    %v374 = vadd.f32 %v216, %v373
    %375 = vmatprep.mubr.bf16.mxu0 0
    %376 = vmatmul.mubr.bf16.gmra.mrb[0].mxu0 %v278
    %v377 = vpop.f32.mrb[0].mxu0
    %v378 = vadd.f32 %v220, %v377
    %v379 = vpop.f32.mrb[0].mxu0
    %v380 = vadd.f32 %v222, %v379
    %v381 = vpop.f32.mrb[0].mxu0
    %v382 = vadd.f32 %v224, %v381
    %v383 = vpop.f32.mrb[0].mxu0
    %v384 = vadd.f32 %v226, %v383
    %385 = vmatprep.mubr.bf16.mxu0 0
    %386 = vmatmul.mubr.bf16.gmra.mrb[0].mxu0 %v281
    %v387 = vpop.f32.mrb[0].mxu0
    %v388 = vadd.f32 %v230, %v387
    %v389 = vpop.f32.mrb[0].mxu0
    %v390 = vadd.f32 %v232, %v389
    %v391 = vpop.f32.mrb[0].mxu0
    %v392 = vadd.f32 %v234, %v391
    %v393 = vpop.f32.mrb[0].mxu0
    %v394 = vadd.f32 %v236, %v393
    %395 = vdwg.mxu0
    %v396 = vld [vmem:[%s4] sm:$0x3]
    %v398 = vlaneseq
    %v399 = vshrl.u32 %v398, 7
    %v400 = vsub.s32 0, %v399
    %v401 = vrot.slane %v396, %v400
    %v402 = vlaneseq
    %v403 = vshrl.u32 %v402, 7
    %v404 = vsub.s32 1, %v403
    %v405 = vrot.slane %v396, %v404
    %v408 = vadd.f32 %v318, %v401
    %v409 = vadd.f32 %v320, %v405
    %v410 = vadd.f32 %v322, %v401
    %v411 = vadd.f32 %v324, %v405
    %v412 = vadd.f32 %v328, %v401
    %v413 = vadd.f32 %v330, %v405
    %v414 = vadd.f32 %v332, %v401
    %v415 = vadd.f32 %v334, %v405
    %v416 = vadd.f32 %v338, %v401
    %v417 = vadd.f32 %v340, %v405
    %v418 = vadd.f32 %v342, %v401
    %v419 = vadd.f32 %v344, %v405
    %v420 = vadd.f32 %v348, %v401
    %v421 = vadd.f32 %v350, %v405
    %v422 = vadd.f32 %v352, %v401
    %v423 = vadd.f32 %v354, %v405
    %v424 = vadd.f32 %v358, %v401
    %v425 = vadd.f32 %v360, %v405
    %v426 = vadd.f32 %v362, %v401
    %v427 = vadd.f32 %v364, %v405
    %v428 = vadd.f32 %v368, %v401
    %v429 = vadd.f32 %v370, %v405
    %v430 = vadd.f32 %v372, %v401
    %v431 = vadd.f32 %v374, %v405
    %v432 = vadd.f32 %v378, %v401
    %v433 = vadd.f32 %v380, %v405
    %v434 = vadd.f32 %v382, %v401
    %v435 = vadd.f32 %v384, %v405
    %v436 = vadd.f32 %v388, %v401
    %v437 = vadd.f32 %v390, %v405
    %v438 = vadd.f32 %v392, %v401
    %v439 = vadd.f32 %v394, %v405
    %v440 = vmax.f32 %v408, 0.0
    %v441 = vmax.f32 %v409, 0.0
    %v442 = vmax.f32 %v410, 0.0
    %v443 = vmax.f32 %v411, 0.0
    %v444 = vmax.f32 %v412, 0.0
    %v445 = vmax.f32 %v413, 0.0
    %v446 = vmax.f32 %v414, 0.0
    %v447 = vmax.f32 %v415, 0.0
    %v448 = vmax.f32 %v416, 0.0
    %v449 = vmax.f32 %v417, 0.0
    %v450 = vmax.f32 %v418, 0.0
    %v451 = vmax.f32 %v419, 0.0
    %v452 = vmax.f32 %v420, 0.0
    %v453 = vmax.f32 %v421, 0.0
    %v454 = vmax.f32 %v422, 0.0
    %v455 = vmax.f32 %v423, 0.0
    %v456 = vmax.f32 %v424, 0.0
    %v457 = vmax.f32 %v425, 0.0
    %v458 = vmax.f32 %v426, 0.0
    %v459 = vmax.f32 %v427, 0.0
    %v460 = vmax.f32 %v428, 0.0
    %v461 = vmax.f32 %v429, 0.0
    %v462 = vmax.f32 %v430, 0.0
    %v463 = vmax.f32 %v431, 0.0
    %v464 = vmax.f32 %v432, 0.0
    %v465 = vmax.f32 %v433, 0.0
    %v466 = vmax.f32 %v434, 0.0
    %v467 = vmax.f32 %v435, 0.0
    %v468 = vmax.f32 %v436, 0.0
    %v469 = vmax.f32 %v437, 0.0
    %v470 = vmax.f32 %v438, 0.0
    %v471 = vmax.f32 %v439, 0.0
    %v472 = vpack.c.bf16 %v442, %v440
    %v473 = vpack.c.bf16 %v443, %v441
    %v474 = vpack.c.bf16 %v446, %v444
    %v475 = vpack.c.bf16 %v447, %v445
    %v476 = vpack.c.bf16 %v450, %v448
    %v477 = vpack.c.bf16 %v451, %v449
    %v478 = vpack.c.bf16 %v454, %v452
    %v479 = vpack.c.bf16 %v455, %v453
    %v480 = vpack.c.bf16 %v458, %v456
    %v481 = vpack.c.bf16 %v459, %v457
    %v482 = vpack.c.bf16 %v462, %v460
    %v483 = vpack.c.bf16 %v463, %v461
    %v484 = vpack.c.bf16 %v466, %v464
    %v485 = vpack.c.bf16 %v467, %v465
    %v486 = vpack.c.bf16 %v470, %v468
    %v487 = vpack.c.bf16 %v471, %v469
    %v488 = vld [vmem:[%s5] sm:$0xff]
    %v489 = vld [vmem:[%s5 + $0x8] sm:$0xff]
    %v490 = vld [vmem:[%s5 + $0x10] sm:$0xff]
    %v491 = vld [vmem:[%s5 + $0x18] sm:$0xff]
    %v492 = vld [vmem:[%s5 + $0x20] sm:$0xff]
    %v493 = vld [vmem:[%s5 + $0x28] sm:$0xff]
    %v494 = vld [vmem:[%s5 + $0x30] sm:$0xff]
    %v495 = vld [vmem:[%s5 + $0x38] sm:$0xff]
    %v496 = vld [vmem:[%s5 + $0x40] sm:$0xff]
    %v497 = vld [vmem:[%s5 + $0x48] sm:$0xff]
    %v498 = vld [vmem:[%s5 + $0x50] sm:$0xff]
    %v499 = vld [vmem:[%s5 + $0x58] sm:$0xff]
    %v500 = vld [vmem:[%s5 + $0x60] sm:$0xff]
    %v501 = vld [vmem:[%s5 + $0x68] sm:$0xff]
    %v502 = vld [vmem:[%s5 + $0x70] sm:$0xff]
    %v503 = vld [vmem:[%s5 + $0x78] sm:$0xff]
    %v504 = vld [vmem:[%s5 + $0x80] sm:$0xff]
    %v505 = vld [vmem:[%s5 + $0x88] sm:$0xff]
    %v506 = vld [vmem:[%s5 + $0x90] sm:$0xff]
    %v507 = vld [vmem:[%s5 + $0x98] sm:$0xff]
    %v508 = vld [vmem:[%s5 + $0xa0] sm:$0xff]
    %v509 = vld [vmem:[%s5 + $0xa8] sm:$0xff]
    %v510 = vld [vmem:[%s5 + $0xb0] sm:$0xff]
    %v511 = vld [vmem:[%s5 + $0xb8] sm:$0xff]
    %v512 = vld [vmem:[%s5 + $0xc0] sm:$0xff]
    %v513 = vld [vmem:[%s5 + $0xc8] sm:$0xff]
    %v514 = vld [vmem:[%s5 + $0xd0] sm:$0xff]
    %v515 = vld [vmem:[%s5 + $0xd8] sm:$0xff]
    %v516 = vld [vmem:[%s5 + $0xe0] sm:$0xff]
    %v517 = vld [vmem:[%s5 + $0xe8] sm:$0xff]
    %v518 = vld [vmem:[%s5 + $0xf0] sm:$0xff]
    %v519 = vld [vmem:[%s5 + $0xf8] sm:$0xff]
    %v520 = vld [vmem:[%s6] sm:$0x3]
    %v522 = vlaneseq
    %v523 = vshrl.u32 %v522, 7
    %v524 = vsub.s32 0, %v523
    %v525 = vrot.slane %v520, %v524
    %v526 = vlaneseq
    %v527 = vshrl.u32 %v526, 7
    %v528 = vsub.s32 1, %v527
    %v529 = vrot.slane %v520, %v528
    %v564 = vunpack.c.l.b16 %v488
    %v565 = vunpack.c.h.b16 %v488
    %v566 = vunpack.c.l.b16 %v489
    %v567 = vunpack.c.h.b16 %v489
    %v568 = vunpack.c.l.b16 %v490
    %v569 = vunpack.c.h.b16 %v490
    %v570 = vunpack.c.l.b16 %v491
    %v571 = vunpack.c.h.b16 %v491
    %v572 = vunpack.c.l.b16 %v492
    %v573 = vunpack.c.h.b16 %v492
    %v574 = vunpack.c.l.b16 %v493
    %v575 = vunpack.c.h.b16 %v493
    %v576 = vunpack.c.l.b16 %v494
    %v577 = vunpack.c.h.b16 %v494
    %v578 = vunpack.c.l.b16 %v495
    %v579 = vunpack.c.h.b16 %v495
    %v580 = vunpack.c.l.b16 %v496
    %v581 = vunpack.c.h.b16 %v496
    %v582 = vunpack.c.l.b16 %v497
    %v583 = vunpack.c.h.b16 %v497
    %v584 = vunpack.c.l.b16 %v498
    %v585 = vunpack.c.h.b16 %v498
    %v586 = vunpack.c.l.b16 %v499
    %v587 = vunpack.c.h.b16 %v499
    %v588 = vunpack.c.l.b16 %v500
    %v589 = vunpack.c.h.b16 %v500
    %v590 = vunpack.c.l.b16 %v501
    %v591 = vunpack.c.h.b16 %v501
    %v592 = vunpack.c.l.b16 %v502
    %v593 = vunpack.c.h.b16 %v502
    %v594 = vunpack.c.l.b16 %v503
    %v595 = vunpack.c.h.b16 %v503
    %v596 = vunpack.c.l.b16 %v504
    %v597 = vunpack.c.h.b16 %v504
    %v598 = vunpack.c.l.b16 %v505
    %v599 = vunpack.c.h.b16 %v505
    %v600 = vunpack.c.l.b16 %v506
    %v601 = vunpack.c.h.b16 %v506
    %v602 = vunpack.c.l.b16 %v507
    %v603 = vunpack.c.h.b16 %v507
    %v604 = vunpack.c.l.b16 %v508
    %v605 = vunpack.c.h.b16 %v508
    %v606 = vunpack.c.l.b16 %v509
    %v607 = vunpack.c.h.b16 %v509
    %v608 = vunpack.c.l.b16 %v510
    %v609 = vunpack.c.h.b16 %v510
    %v610 = vunpack.c.l.b16 %v511
    %v611 = vunpack.c.h.b16 %v511
    %v612 = vunpack.c.l.b16 %v512
    %v613 = vunpack.c.h.b16 %v512
    %v614 = vunpack.c.l.b16 %v513
    %v615 = vunpack.c.h.b16 %v513
    %v616 = vunpack.c.l.b16 %v514
    %v617 = vunpack.c.h.b16 %v514
    %v618 = vunpack.c.l.b16 %v515
    %v619 = vunpack.c.h.b16 %v515
    %v620 = vunpack.c.l.b16 %v516
    %v621 = vunpack.c.h.b16 %v516
    %v622 = vunpack.c.l.b16 %v517
    %v623 = vunpack.c.h.b16 %v517
    %v624 = vunpack.c.l.b16 %v518
    %v625 = vunpack.c.h.b16 %v518
    %v626 = vunpack.c.l.b16 %v519
    %v627 = vunpack.c.h.b16 %v519
    %v628 = vpack.c.b16 %v566, %v564
    %v629 = vpack.c.b16 %v567, %v565
    %v630 = vpack.c.b16 %v570, %v568
    %v631 = vpack.c.b16 %v571, %v569
    %v632 = vpack.c.b16 %v574, %v572
    %v633 = vpack.c.b16 %v575, %v573
    %v634 = vpack.c.b16 %v578, %v576
    %v635 = vpack.c.b16 %v579, %v577
    %v636 = vpack.c.b16 %v582, %v580
    %v637 = vpack.c.b16 %v583, %v581
    %v638 = vpack.c.b16 %v586, %v584
    %v639 = vpack.c.b16 %v587, %v585
    %v640 = vpack.c.b16 %v590, %v588
    %v641 = vpack.c.b16 %v591, %v589
    %v642 = vpack.c.b16 %v594, %v592
    %v643 = vpack.c.b16 %v595, %v593
    %v644 = vpack.c.b16 %v598, %v596
    %v645 = vpack.c.b16 %v599, %v597
    %v646 = vpack.c.b16 %v602, %v600
    %v647 = vpack.c.b16 %v603, %v601
    %v648 = vpack.c.b16 %v606, %v604
    %v649 = vpack.c.b16 %v607, %v605
    %v650 = vpack.c.b16 %v610, %v608
    %v651 = vpack.c.b16 %v611, %v609
    %v652 = vpack.c.b16 %v614, %v612
    %v653 = vpack.c.b16 %v615, %v613
    %v654 = vpack.c.b16 %v618, %v616
    %v655 = vpack.c.b16 %v619, %v617
    %v656 = vpack.c.b16 %v622, %v620
    %v657 = vpack.c.b16 %v623, %v621
    %v658 = vpack.c.b16 %v626, %v624
    %v659 = vpack.c.b16 %v627, %v625
    %692 = vmatprep.subr.bf16.mxu0 %v629
    %693 = vmatpush1.bf16.msra.mxu0 %v628
    %694 = vmatprep.subr.bf16.mxu0 %v631
    %695 = vmatpush1.bf16.msra.mxu0 %v630
    %696 = vmatprep.subr.bf16.mxu0 %v633
    %697 = vmatpush1.bf16.msra.mxu0 %v632
    %698 = vmatprep.subr.bf16.mxu0 %v635
    %699 = vmatpush1.bf16.msra.mxu0 %v634
    %700 = vmatprep.subr.bf16.mxu0 %v637
    %701 = vmatpush1.bf16.msra.mxu0 %v636
    %702 = vmatprep.subr.bf16.mxu0 %v639
    %703 = vmatpush1.bf16.msra.mxu0 %v638
    %704 = vmatprep.subr.bf16.mxu0 %v641
    %705 = vmatpush1.bf16.msra.mxu0 %v640
    %706 = vmatprep.subr.bf16.mxu0 %v643
    %707 = vmatpush1.bf16.msra.mxu0 %v642
    %708 = vmatprep.subr.bf16.mxu0 %v645
    %709 = vmatpush1.bf16.msra.mxu0 %v644
    %710 = vmatprep.subr.bf16.mxu0 %v647
    %711 = vmatpush1.bf16.msra.mxu0 %v646
    %712 = vmatprep.subr.bf16.mxu0 %v649
    %713 = vmatpush1.bf16.msra.mxu0 %v648
    %714 = vmatprep.subr.bf16.mxu0 %v651
    %715 = vmatpush1.bf16.msra.mxu0 %v650
    %716 = vmatprep.subr.bf16.mxu0 %v653
    %717 = vmatpush1.bf16.msra.mxu0 %v652
    %718 = vmatprep.subr.bf16.mxu0 %v655
    %719 = vmatpush1.bf16.msra.mxu0 %v654
    %720 = vmatprep.subr.bf16.mxu0 %v657
    %721 = vmatpush1.bf16.msra.mxu0 %v656
    %722 = vmatprep.subr.bf16.mxu0 %v659
    %723 = vmatpush1.bf16.msra.mxu0 %v658
    %724 = vmatprep.mubr.bf16.mxu0 %v473
    %725 = vmatmul.mubr.bf16.gmra.mrb[0].mxu0 %v472
    %v726 = vpop.f32.mrb[0].mxu0
    %v727 = vadd.f32 %v525, %v726
    %v728 = vpop.f32.mrb[0].mxu0
    %v729 = vadd.f32 %v529, %v728
    %v730 = vpop.f32.mrb[0].mxu0
    %v731 = vadd.f32 %v525, %v730
    %v732 = vpop.f32.mrb[0].mxu0
    %v733 = vadd.f32 %v529, %v732
    %734 = vmatprep.mubr.bf16.mxu0 %v475
    %735 = vmatmul.mubr.bf16.gmra.mrb[0].mxu0 %v474
    %v736 = vpop.f32.mrb[0].mxu0
    %v737 = vadd.f32 %v525, %v736
    %v738 = vpop.f32.mrb[0].mxu0
    %v739 = vadd.f32 %v529, %v738
    %v740 = vpop.f32.mrb[0].mxu0
    %v741 = vadd.f32 %v525, %v740
    %v742 = vpop.f32.mrb[0].mxu0
    %v743 = vadd.f32 %v529, %v742
    %744 = vmatprep.mubr.bf16.mxu0 %v477
    %745 = vmatmul.mubr.bf16.gmra.mrb[0].mxu0 %v476
    %v746 = vpop.f32.mrb[0].mxu0
    %v747 = vadd.f32 %v525, %v746
    %v748 = vpop.f32.mrb[0].mxu0
    %v749 = vadd.f32 %v529, %v748
    %v750 = vpop.f32.mrb[0].mxu0
    %v751 = vadd.f32 %v525, %v750
    %v752 = vpop.f32.mrb[0].mxu0
    %v753 = vadd.f32 %v529, %v752
    %754 = vmatprep.mubr.bf16.mxu0 %v479
    %755 = vmatmul.mubr.bf16.gmra.mrb[0].mxu0 %v478
    %v756 = vpop.f32.mrb[0].mxu0
    %v757 = vadd.f32 %v525, %v756
    %v758 = vpop.f32.mrb[0].mxu0
    %v759 = vadd.f32 %v529, %v758
    %v760 = vpop.f32.mrb[0].mxu0
    %v761 = vadd.f32 %v525, %v760
    %v762 = vpop.f32.mrb[0].mxu0
    %v763 = vadd.f32 %v529, %v762
    %764 = vmatprep.mubr.bf16.mxu0 %v481
    %765 = vmatmul.mubr.bf16.gmra.mrb[0].mxu0 %v480
    %v766 = vpop.f32.mrb[0].mxu0
    %v767 = vadd.f32 %v525, %v766
    %v768 = vpop.f32.mrb[0].mxu0
    %v769 = vadd.f32 %v529, %v768
    %v770 = vpop.f32.mrb[0].mxu0
    %v771 = vadd.f32 %v525, %v770
    %v772 = vpop.f32.mrb[0].mxu0
    %v773 = vadd.f32 %v529, %v772
    %774 = vmatprep.mubr.bf16.mxu0 %v483
    %775 = vmatmul.mubr.bf16.gmra.mrb[0].mxu0 %v482
    %v776 = vpop.f32.mrb[0].mxu0
    %v777 = vadd.f32 %v525, %v776
    %v778 = vpop.f32.mrb[0].mxu0
    %v779 = vadd.f32 %v529, %v778
    %v780 = vpop.f32.mrb[0].mxu0
    %v781 = vadd.f32 %v525, %v780
    %v782 = vpop.f32.mrb[0].mxu0
    %v783 = vadd.f32 %v529, %v782
    %784 = vmatprep.mubr.bf16.mxu0 %v485
    %785 = vmatmul.mubr.bf16.gmra.mrb[0].mxu0 %v484
    %v786 = vpop.f32.mrb[0].mxu0
    %v787 = vadd.f32 %v525, %v786
    %v788 = vpop.f32.mrb[0].mxu0
    %v789 = vadd.f32 %v529, %v788
    %v790 = vpop.f32.mrb[0].mxu0
    %v791 = vadd.f32 %v525, %v790
    %v792 = vpop.f32.mrb[0].mxu0
    %v793 = vadd.f32 %v529, %v792
    %794 = vmatprep.mubr.bf16.mxu0 %v487
    %795 = vmatmul.mubr.bf16.gmra.mrb[0].mxu0 %v486
    %v796 = vpop.f32.mrb[0].mxu0
    %v797 = vadd.f32 %v525, %v796
    %v798 = vpop.f32.mrb[0].mxu0
    %v799 = vadd.f32 %v529, %v798
    %v800 = vpop.f32.mrb[0].mxu0
    %v801 = vadd.f32 %v525, %v800
    %v802 = vpop.f32.mrb[0].mxu0
    %v803 = vadd.f32 %v529, %v802
    %804 = vdwg.mxu0
    %v805 = vmax.f32 %v727, 0.0
    %v806 = vmax.f32 %v729, 0.0
    %v807 = vmax.f32 %v731, 0.0
    %v808 = vmax.f32 %v733, 0.0
    %v809 = vmax.f32 %v737, 0.0
    %v810 = vmax.f32 %v739, 0.0
    %v811 = vmax.f32 %v741, 0.0
    %v812 = vmax.f32 %v743, 0.0
    %v813 = vmax.f32 %v747, 0.0
    %v814 = vmax.f32 %v749, 0.0
    %v815 = vmax.f32 %v751, 0.0
    %v816 = vmax.f32 %v753, 0.0
    %v817 = vmax.f32 %v757, 0.0
    %v818 = vmax.f32 %v759, 0.0
    %v819 = vmax.f32 %v761, 0.0
    %v820 = vmax.f32 %v763, 0.0
    %v821 = vmax.f32 %v767, 0.0
    %v822 = vmax.f32 %v769, 0.0
    %v823 = vmax.f32 %v771, 0.0
    %v824 = vmax.f32 %v773, 0.0
    %v825 = vmax.f32 %v777, 0.0
    %v826 = vmax.f32 %v779, 0.0
    %v827 = vmax.f32 %v781, 0.0
    %v828 = vmax.f32 %v783, 0.0
    %v829 = vmax.f32 %v787, 0.0
    %v830 = vmax.f32 %v789, 0.0
    %v831 = vmax.f32 %v791, 0.0
    %v832 = vmax.f32 %v793, 0.0
    %v833 = vmax.f32 %v797, 0.0
    %v834 = vmax.f32 %v799, 0.0
    %v835 = vmax.f32 %v801, 0.0
    %v836 = vmax.f32 %v803, 0.0
    %v837 = vld [vmem:[%s7] sm:$0x3]
    %s838 = sld [smem:[#allocation2]]
    %v839 = vstv %s838
    %v841 = vlaneseq
    %v842 = vshrl.u32 %v841, 7
    %v843 = vsub.s32 0, %v842
    %v844 = vrot.slane %v837, %v843
    %v845 = vlaneseq
    %v846 = vshrl.u32 %v845, 7
    %v847 = vsub.s32 1, %v846
    %v848 = vrot.slane %v837, %v847
    %851 = vmatprep.subr.mxu0 %v806
    %852 = vmatpush1.xpose.msra.mxu0 %v805
    %853 = vmatprep.subr.mxu0 %v808
    %854 = vmatpush1.xpose.msra.mxu0 %v807
    %855 = vmatprep.subr.mxu0 %v810
    %856 = vmatpush1.xpose.msra.mxu0 %v809
    %857 = vmatprep.subr.mxu0 %v812
    %858 = vmatpush1.xpose.msra.mxu0 %v811
    %859 = vmatprep.subr.mxu0 %v814
    %860 = vmatpush1.xpose.msra.mxu0 %v813
    %861 = vmatprep.subr.mxu0 %v816
    %862 = vmatpush1.xpose.msra.mxu0 %v815
    %863 = vmatprep.subr.mxu0 %v818
    %864 = vmatpush1.xpose.msra.mxu0 %v817
    %865 = vmatprep.subr.mxu0 %v820
    %866 = vmatpush1.xpose.msra.mxu0 %v819
    %867 = vmatprep.subr.mxu0 %v822
    %868 = vmatpush1.xpose.msra.mxu0 %v821
    %869 = vmatprep.subr.mxu0 %v824
    %870 = vmatpush1.xpose.msra.mxu0 %v823
    %871 = vmatprep.subr.mxu0 %v826
    %872 = vmatpush1.xpose.msra.mxu0 %v825
    %873 = vmatprep.subr.mxu0 %v828
    %874 = vmatpush1.xpose.msra.mxu0 %v827
    %875 = vmatprep.subr.mxu0 %v830
    %876 = vmatpush1.xpose.msra.mxu0 %v829
    %877 = vmatprep.subr.mxu0 %v832
    %878 = vmatpush1.xpose.msra.mxu0 %v831
    %879 = vmatprep.subr.mxu0 %v834
    %880 = vmatpush1.xpose.msra.mxu0 %v833
    %881 = vmatprep.subr.mxu0 %v836
    %882 = vmatpush1.xpose.msra.mxu0 %v835
    %883 = vmatprep.subr.mxu0 0.0
    %884 = vmatpush1.xpose.msra.mxu0 0.0
    %885 = vmatprep.subr.mxu0 0.0
    %886 = vmatpush1.xpose.msra.mxu0 0.0
    %887 = vmatprep.subr.mxu0 0.0
    %888 = vmatpush1.xpose.msra.mxu0 0.0
    %889 = vmatprep.subr.mxu0 0.0
    %890 = vmatpush1.xpose.msra.mxu0 0.0
    %891 = vmatprep.subr.mxu0 0.0
    %892 = vmatpush1.xpose.msra.mxu0 0.0
    %893 = vmatprep.subr.mxu0 0.0
    %894 = vmatpush1.xpose.msra.mxu0 0.0
    %895 = vmatprep.subr.mxu0 0.0
    %896 = vmatpush1.xpose.msra.mxu0 0.0
    %897 = vmatprep.subr.mxu0 0.0
    %898 = vmatpush1.xpose.msra.mxu0 0.0
    %899 = vmatprep.subr.mxu0 0.0
    %900 = vmatpush1.xpose.msra.mxu0 0.0
    %901 = vmatprep.subr.mxu0 0.0
    %902 = vmatpush1.xpose.msra.mxu0 0.0
    %903 = vmatprep.subr.mxu0 0.0
    %904 = vmatpush1.xpose.msra.mxu0 0.0
    %905 = vmatprep.subr.mxu0 0.0
    %906 = vmatpush1.xpose.msra.mxu0 0.0
    %907 = vmatprep.subr.mxu0 0.0
    %908 = vmatpush1.xpose.msra.mxu0 0.0
    %909 = vmatprep.subr.mxu0 0.0
    %910 = vmatpush1.xpose.msra.mxu0 0.0
    %911 = vmatprep.subr.mxu0 0.0
    %912 = vmatpush1.xpose.msra.mxu0 0.0
    %913 = vmatprep.subr.mxu0 0.0
    %914 = vmatpush1.xpose.msra.mxu0 0.0
    %915 = vmatprep.mubr.f32.mxu0 %v848
    %916 = vmatmul.mubr.f32.gmra.mrb[0].mxu0 %v844
    %v917 = vpop.f32.mrb[0].mxu0
    %v918 = vadd.f32 %v839, %v917
    %v919 = vpop.f32.mrb[0].mxu0
    %920 = vdwg.mxu0
    %921 = vst [vmem:[#allocation3] sm:$0x1] %v918
    // Predicated region
    $region38: #{tpu_custom_call.1} parent=1 // pred_check
      _
    $region39: #{tpu_custom_call.1} parent=1 // pred_check_branch
      %923 = sbr.rel (0) target = $region41
    $region40: #{tpu_custom_call.1} parent=1 // pred_region
      %s925 = ssub.s32 16, 16
      %926 = vsyncadd [#allocation4], %s925
      %s928 = sshll.u32 [#allocation3], 4
      %s929 = int_to_ptr.vmem [resolvable:$true] %s928
      %931 = dma.vmem_to_hbm [thread:$0]  %s929, 16, %s9, [#allocation4]
    $region41: #{tpu_custom_call.1} parent=1 // pred_fallthru
      _
    // Predicated region
    $region42: #{tpu_custom_call.1} parent=1 // pred_check
      _
    $region43: #{tpu_custom_call.1} parent=1 // pred_check_branch
      %933 = sbr.rel (0) target = $region45
    $region44: #{tpu_custom_call.1} parent=1 // pred_region
      %934 = dma.done [#allocation4], 16
    $region45: #{tpu_custom_call.1} parent=1 // pred_fallthru
      _
    %935 = vsyncpa [#allocation4], 1

</llo_original>
